<compile_context>
chip_gen: v5e
topology: v5e:2x2
jax: 0.10.0
libtpu: 0.0.40
codegen_flags: <defaults>
</compile_context>

<pallas_src>
import functools

import jax
import jax.numpy as jnp
from jax.experimental import pallas as pl
from jax.experimental.pallas import tpu as pltpu

NUM_CLASSES = 16
LR = 1e-3

# Conservative per-kernel VMEM plan: tile budget fits v7x's 64 MiB physical
# VMEM with headroom; the scoped limit is raised above v5e's 16 MiB / v6e's
# 32 MiB defaults so larger batch tiles actually compile.
_VMEM_TILE_BUDGET = 32 * 1024 * 1024
_VMEM_LIMIT_BYTES = 48 * 1024 * 1024


def _choose_tiling(B, D):
    """Pick (batch-tile rows, #core splits) from the per-generation-safe VMEM budget."""
    # bytes of VMEM per live batch row: double-buffered f32 x + bf16 copy + logits.
    per_row = 10 * D + 1024
    cap = max(8, _VMEM_TILE_BUDGET // per_row)

    # Leading "parallel" grid axis: split the batch across TensorCores (v7x has
    # 2 TCs; on v5e/v6e this is just a sequential outer loop) when it's big
    # enough to be worth it and splits cleanly.
    ncores = 2 if (B >= 512 and B % 2 == 0 and (B // 2) % 8 == 0) else 1
    rows = B // ncores

    if rows <= cap:
        return rows, ncores                       # whole per-core slice = one tile
    for tb in (1024, 512, 256, 128, 64, 32, 16, 8):
        if tb <= cap and rows % tb == 0:
            return tb, ncores
    # TODO(synk): pad + mask ragged batches, and add a K (feature-dim) grid axis
    # so raw-image-sized D (e.g. 150k) fits VMEM; not needed for this model size.
    raise NotImplementedError("batch/feature size not supported by current tiling")


# ----------------------------------------------------------------------------
# Fused Pallas kernel: forward + `our` loss + analytic backward.
# Grid = (cores, batch tiles); axis 0 is "parallel" (per-core partial
# accumulators), axis 1 is the batch reduction ("arbitrary").
# ----------------------------------------------------------------------------
def _cstta_kernel(x_ref, wb_ref, b_ref,
                  logits_ref, loss_ref, gwt_ref, gb_ref,
                  *, inv_b, inv_c):
    i = pl.program_id(1)                  # batch-tile index within this core

    x = x_ref[...]                        # (tb, D) f32 batch tile
    xb = x.astype(jnp.bfloat16)           # single cast, reused by fwd + bwd GEMMs

    # ---- forward: bf16 operands on the MXU, f32 accumulation ----------------
    logits = jnp.dot(xb, wb_ref[...],
                     preferred_element_type=jnp.float32) + b_ref[...]   # (tb, C)
    logits_ref[...] = logits

    C = logits.shape[1]

    # ---- `our` loss (per-row scalars; no full log-softmax tile) --------------
    m = jnp.max(logits, axis=1, keepdims=True)                          # (tb, 1)
    ex = jnp.exp(logits - m)
    denom = jnp.sum(ex, axis=1, keepdims=True)                          # (tb, 1)
    inv_denom = pl.reciprocal(denom, approx=True)                       # EUP slot
    p = ex * inv_denom                                                  # softmax (bwd)

    # top-2 of softmax == top-2 of logits (softmax is monotone); descending-sort
    # tie semantics: duplicated max -> gap 0 -> weight clamps to 5.
    col = jax.lax.broadcasted_iota(jnp.int32, logits.shape, 1)
    first_idx = jnp.min(jnp.where(logits == m, col, C), axis=1, keepdims=True)
    x2 = jnp.max(jnp.where(col == first_idx, -jnp.inf, logits),
                 axis=1, keepdims=True)
    # weight = min(1/(p_max - p_sub), 5) = min(denom / (1 - exp(x2 - m)), 5).
    # Single EXACT divide (clamp-sensitive path kept off the approx reciprocal).
    weight = jnp.minimum(denom / (1.0 - jnp.exp(x2 - m)), 5.0)          # detached

    # mean_c(weight * log_softmax) == weight * (mean_c(logits) - m - log(denom))
    per_sample = weight * (jnp.mean(logits, axis=1, keepdims=True)
                           - m - jnp.log(denom))                        # (tb, 1)

    # ---- analytic backward (weight detached) ---------------------------------
    # d loss / d logits = (weight / B) * (1/C - softmax)
    dl = (weight * inv_b) * (inv_c - p)                                 # (tb, C) f32
    # gw^T = dl^T @ x -> (C, D): bf16 MXU GEMM, only the tiny (tb, C) operand
    # is transposed; the accumulator is lane-dense (last dim D).
    gwt = jax.lax.dot_general(dl.astype(jnp.bfloat16), xb,
                              (((0,), (0,)), ((), ())),
                              preferred_element_type=jnp.float32)       # (C, D)
    gb = jnp.sum(dl, axis=0, keepdims=True)                             # (1, C)

    # ---- accumulate per-core partials across batch tiles ---------------------
    @pl.when(i == 0)
    def _init():
        loss_ref[...] = jnp.zeros_like(loss_ref)
        gwt_ref[...] = jnp.zeros_like(gwt_ref)
        gb_ref[...] = jnp.zeros_like(gb_ref)

    loss_ref[...] += inv_b * jnp.sum(per_sample, axis=0, keepdims=True)
    gwt_ref[...] += gwt
    gb_ref[...] += gb


def cstta_step(x_flat, w, b):
    """One fused forward + `our`-loss + analytic-backward step, then plain SGD.

    w is in torch nn.Linear layout (NUM_CLASSES, D); forward is x @ w.T + b.
    Returns (logits, loss, w_new, b_new); logits are pre-update (torch semantics).
    """
    B, D = x_flat.shape
    C = w.shape[0]
    tb, ncores = _choose_tiling(B, D)
    inner = B // (ncores * tb)

    # Pre-cast / pre-transpose the tiny (C, D) weight ONCE per step (outside the
    # grid) so the in-kernel forward MXU op is in natural (D-contracting) form
    # with no per-grid-step cast or XLU transpose.
    wb_dc = w.T.astype(jnp.bfloat16)          # (D, C) bf16, resident in VMEM
    b_row = b.reshape(1, C)

    kernel = functools.partial(_cstta_kernel, inv_b=1.0 / B, inv_c=1.0 / C)

    logits, loss_parts, gwt_parts, gb_parts = pl.pallas_call(
        kernel,
        grid=(ncores, inner),
        in_specs=[
            pl.BlockSpec((tb, D), lambda c, i: (c * inner + i, 0)),   # x tile (pipelined)
            pl.BlockSpec((D, C), lambda c, i: (0, 0)),                # bf16 weight (resident)
            pl.BlockSpec((1, C), lambda c, i: (0, 0)),                # bias (resident)
        ],
        out_specs=[
            pl.BlockSpec((tb, C), lambda c, i: (c * inner + i, 0)),   # logits tile
            pl.BlockSpec((None, 1, 1), lambda c, i: (c, 0, 0)),       # per-core loss partial
            pl.BlockSpec((None, C, D), lambda c, i: (c, 0, 0)),       # per-core gw^T partial
            pl.BlockSpec((None, 1, C), lambda c, i: (c, 0, 0)),       # per-core gb partial
        ],
        out_shape=[
            jax.ShapeDtypeStruct((B, C), jnp.float32),
            jax.ShapeDtypeStruct((ncores, 1, 1), jnp.float32),
            jax.ShapeDtypeStruct((ncores, C, D), jnp.float32),
            jax.ShapeDtypeStruct((ncores, 1, C), jnp.float32),
        ],
        compiler_params=pltpu.CompilerParams(
            # axis 0: per-core split (megacore on v7x); axis 1: batch reduction.
            dimension_semantics=("parallel", "arbitrary"),
            vmem_limit_bytes=_VMEM_LIMIT_BYTES,
        ),
    )(x_flat, wb_dc, b_row)

    # Tiny epilogue (O(C*D)): combine per-core partials and apply plain SGD.
    loss = jnp.sum(loss_parts)
    gw = jnp.sum(gwt_parts, axis=0)                 # (C, D), lane-dense
    gb = jnp.sum(gb_parts, axis=0).reshape(C)
    w_new = w - LR * gw
    b_new = b - LR * gb
    return logits, loss, w_new, b_new


# TODO(synk): generic optimizers (momentum/Adam state) and the episodic
# reset / deepcopy bookkeeping of the original module are host-side; only the
# plain-SGD path used by the reference forward is fused here.
# TODO(synk): in a serving loop, donate w/b (jax.jit donate_argnums) so the
# parameter update reuses the existing HBM buffers in place.
@functools.partial(jax.jit, static_argnames=("steps",))
def cstta_forward(x, w, b, steps=1):
    B = x.shape[0]
    x_flat = x.reshape(B, -1)
    outputs = loss = None
    for _ in range(steps):
        outputs, loss, w, b = cstta_step(x_flat, w, b)   # outputs are pre-update
    return outputs, loss, w, b


# ----------------------------------------------------------------------------
# Pure-JAX references for correctness checks (not on the hot path).
# ----------------------------------------------------------------------------
def _loss_and_dlogits(logits):
    """Mirror of the in-kernel loss math + analytic d(loss)/d(logits) (exact recips)."""
    B, C = logits.shape
    m = jnp.max(logits, axis=1, keepdims=True)
    ex = jnp.exp(logits - m)
    denom = jnp.sum(ex, axis=1, keepdims=True)
    p = ex / denom
    col = jax.lax.broadcasted_iota(jnp.int32, logits.shape, 1)
    first_idx = jnp.min(jnp.where(logits == m, col, C), axis=1, keepdims=True)
    x2 = jnp.max(jnp.where(col == first_idx, -jnp.inf, logits),
                 axis=1, keepdims=True)
    weight = jnp.minimum(denom / (1.0 - jnp.exp(x2 - m)), 5.0)
    per_sample = weight * (jnp.mean(logits, axis=1, keepdims=True)
                           - m - jnp.log(denom))
    loss = jnp.mean(per_sample)
    dlogits = (weight / B) * (1.0 / C - p)
    return loss, dlogits


def _reference_step(x_flat, w, b):
    """Mirrors the fused kernel (same bf16 fwd/bwd matmuls, analytic grads)."""
    xb = x_flat.astype(jnp.bfloat16)
    wb = w.T.astype(jnp.bfloat16)
    logits = jnp.dot(xb, wb, preferred_element_type=jnp.float32) + b[None, :]
    loss, dlogits = _loss_and_dlogits(logits)
    gw = jnp.dot(dlogits.astype(jnp.bfloat16).T, xb,
                 preferred_element_type=jnp.float32)       # (C, D)
    gb = jnp.sum(dlogits, axis=0)
    return logits, loss, w - LR * gw, b - LR * gb


def _torch_style_loss(w, b, x_flat):
    """Literal f32 port of the PyTorch `our` loss (top_k, detached weight)."""
    logits = jnp.dot(x_flat, w.T) + b[None, :]
    p = jax.nn.softmax(logits, axis=1)
    logp = jax.nn.log_softmax(logits, axis=1)
    top2 = jax.lax.top_k(p, 2)[0]
    gap = 1.0 / (top2[:, 0] - top2[:, 1])
    weight = jax.lax.stop_gradient(jnp.minimum(gap, 5.0))[:, None]
    return jnp.mean(jnp.mean(weight * logp, axis=1))


if __name__ == "__main__":
    key = jax.random.PRNGKey(0)
    kx, kw = jax.random.split(key)

    B, C_in, H, W = 2, 4, 16, 16
    D = C_in * H * W

    x = jax.random.normal(kx, (B, C_in, H, W), dtype=jnp.float32)
    # torch nn.Linear layout: (out_features, in_features)
    w = 0.02 * jax.random.normal(kw, (NUM_CLASSES, D), dtype=jnp.float32)
    b = jnp.zeros((NUM_CLASSES,), dtype=jnp.float32)

    outputs, loss, w_new, b_new = cstta_forward(x, w, b, steps=1)
    jax.block_until_ready((outputs, loss, w_new, b_new))
    assert outputs.shape == (B, NUM_CLASSES)

    x_flat = x.reshape(B, -1)

    # 1) fused Pallas kernel vs its pure-JAX mirror (same bf16 matmul semantics;
    #    the kernel's approx softmax-reciprocal only perturbs grads at ~1e-4).
    ref_logits, ref_loss, ref_w, ref_b = _reference_step(x_flat, w, b)
    assert jnp.allclose(outputs, ref_logits, atol=1e-3, rtol=1e-3)
    assert jnp.allclose(loss, ref_loss, atol=2e-3, rtol=2e-3), (loss, ref_loss)
    assert jnp.allclose(w_new, ref_w, atol=5e-5, rtol=1e-3)
    assert jnp.allclose(b_new, ref_b, atol=5e-5, rtol=1e-3)

    # 2) analytic backward vs autodiff of a literal (f32, top_k) port of the
    #    PyTorch loss -- validates the masked top-2 trick, the reduced loss
    #    formula and the hand gradient used inside the kernel.
    logits_f32 = x_flat @ w.T + b[None, :]
    loss_f32, dl_f32 = _loss_and_dlogits(logits_f32)
    gw_an = dl_f32.T @ x_flat                      # (C, D)
    gb_an = jnp.sum(dl_f32, axis=0)
    loss_ad, (gw_ad, gb_ad) = jax.value_and_grad(
        _torch_style_loss, argnums=(0, 1))(w, b, x_flat)
    assert jnp.allclose(loss_f32, loss_ad, atol=1e-5, rtol=1e-5)
    assert jnp.allclose(gw_an, gw_ad, atol=1e-5, rtol=1e-4)
    assert jnp.allclose(gb_an, gb_ad, atol=1e-5, rtol=1e-4)

    print("KERNEL_OK")
</pallas_src>

<mosaic_0001>
module attributes {stable_mosaic.version = 11 : i64} {
  func.func @_cstta_kernel(%arg0: i32, %arg1: i32, %arg2: memref<2x1024xf32, #tpu.memory_space<vmem>>, %arg3: memref<1024x16xbf16, #tpu.memory_space<vmem>>, %arg4: memref<1x16xf32, #tpu.memory_space<vmem>>, %arg5: memref<2x16xf32, #tpu.memory_space<vmem>>, %arg6: memref<1x1x1xf32, #tpu.memory_space<vmem>>, %arg7: memref<1x16x1024xf32, #tpu.memory_space<vmem>>, %arg8: memref<1x1x16xf32, #tpu.memory_space<vmem>>) attributes {dimension_semantics = [#tpu.dimension_semantics<parallel>, #tpu.dimension_semantics<arbitrary>], iteration_bounds = array<i64: 1, 1>, scalar_prefetch = 0 : i64, scratch_operands = 0 : i64, tpu.core_type = #tpu.core_type<tc>, window_params = [{transform_indices = @transform_0, window_bounds = array<i64: 2, 1024>}, {pipeline_mode = #tpu.pipeline_mode<synchronous>, transform_indices = @transform_1, window_bounds = array<i64: 1024, 16>}, {pipeline_mode = #tpu.pipeline_mode<synchronous>, transform_indices = @transform_2, window_bounds = array<i64: 1, 16>}, {transform_indices = @transform_3, window_bounds = array<i64: 2, 16>}, {transform_indices = @transform_4, window_bounds = array<i64: 1, 1, 1>}, {transform_indices = @transform_5, window_bounds = array<i64: 1, 16, 1024>}, {transform_indices = @transform_6, window_bounds = array<i64: 1, 1, 16>}]} {
    %c0 = arith.constant 0 : index
    %c0_0 = arith.constant 0 : index
    %0 = vector.load %arg2[%c0, %c0_0] : memref<2x1024xf32, #tpu.memory_space<vmem>>, vector<2x1024xf32>
    %1 = arith.truncf %0 : vector<2x1024xf32> to vector<2x1024xbf16>
    %c0_1 = arith.constant 0 : index
    %c0_2 = arith.constant 0 : index
    %2 = vector.load %arg3[%c0_1, %c0_2] : memref<1024x16xbf16, #tpu.memory_space<vmem>>, vector<1024x16xbf16>
    %cst = arith.constant dense<0.000000e+00> : vector<2x16xf32>
    %3 = tpu.matmul %1, %2, %cst {dimension_numbers = #tpu.dot_dimension_numbers<[1], [0], [0], [1], [0, 0, 1, 1], [], []>} : vector<2x1024xbf16>, vector<1024x16xbf16>, vector<2x16xf32> -> vector<2x16xf32>
    %c0_3 = arith.constant 0 : index
    %c0_4 = arith.constant 0 : index
    %4 = vector.load %arg4[%c0_3, %c0_4] : memref<1x16xf32, #tpu.memory_space<vmem>>, vector<1x16xf32>
    %5 = vector.broadcast %4 : vector<1x16xf32> to vector<2x16xf32>
    %6 = arith.addf %3, %5 : vector<2x16xf32>
    %c0_5 = arith.constant 0 : index
    %c0_6 = arith.constant 0 : index
    %7 = vector.load %arg5[%c0_5, %c0_6] : memref<2x16xf32, #tpu.memory_space<vmem>>, vector<2x16xf32>
    tpu.vector_store %arg5[%c0_5, %c0_6], %6 {strides = array<i32>} : memref<2x16xf32, #tpu.memory_space<vmem>>, vector<2x16xf32>,
    %cst_7 = arith.constant dense<0xFF800000> : vector<2xf32>
    %8 = vector.multi_reduction <maximumf>, %6, %cst_7 [1] : vector<2x16xf32> to vector<2xf32>
    %9 = vector.shape_cast %8 : vector<2xf32> to vector<2x1xf32>
    %10 = vector.broadcast %9 : vector<2x1xf32> to vector<2x16xf32>
    %11 = arith.subf %6, %10 : vector<2x16xf32>
    %12 = math.exp %11 : vector<2x16xf32>
    %cst_8 = arith.constant dense<0.000000e+00> : vector<2xf32>
    %13 = vector.multi_reduction <add>, %12, %cst_8 [1] : vector<2x16xf32> to vector<2xf32>
    %14 = vector.shape_cast %13 : vector<2xf32> to vector<2x1xf32>
    %15 = tpu.reciprocal %14 {approx = true} : vector<2x1xf32> -> vector<2x1xf32>
    %16 = vector.broadcast %15 : vector<2x1xf32> to vector<2x16xf32>
    %17 = arith.mulf %12, %16 : vector<2x16xf32>
    %18 = tpu.iota {dimensions = array<i32: 1>} : vector<2x16xi32>
    %19 = vector.broadcast %9 : vector<2x1xf32> to vector<2x16xf32>
    %20 = arith.cmpf oeq, %6, %19 : vector<2x16xf32>
    %c16_i32 = arith.constant 16 : i32
    %21 = vector.broadcast %c16_i32 : i32 to vector<2x16xi32>
    %22 = arith.select %20, %18, %21 : vector<2x16xi1>, vector<2x16xi32>
    %cst_9 = arith.constant dense<2147483647> : vector<2xi32>
    %23 = vector.multi_reduction <minsi>, %22, %cst_9 [1] : vector<2x16xi32> to vector<2xi32>
    %24 = vector.shape_cast %23 : vector<2xi32> to vector<2x1xi32>
    %25 = vector.broadcast %24 : vector<2x1xi32> to vector<2x16xi32>
    %26 = arith.cmpi eq, %18, %25 : vector<2x16xi32>
    %cst_10 = arith.constant 0xFF800000 : f32
    %27 = vector.broadcast %cst_10 : f32 to vector<2x16xf32>
    %28 = arith.select %26, %27, %6 : vector<2x16xi1>, vector<2x16xf32>
    %cst_11 = arith.constant dense<0xFF800000> : vector<2xf32>
    %29 = vector.multi_reduction <maximumf>, %28, %cst_11 [1] : vector<2x16xf32> to vector<2xf32>
    %30 = vector.shape_cast %29 : vector<2xf32> to vector<2x1xf32>
    %31 = arith.subf %30, %9 : vector<2x1xf32>
    %32 = math.exp %31 : vector<2x1xf32>
    %cst_12 = arith.constant 1.000000e+00 : f32
    %33 = vector.broadcast %cst_12 : f32 to vector<2x1xf32>
    %34 = arith.subf %33, %32 : vector<2x1xf32>
    %35 = arith.divf %14, %34 : vector<2x1xf32>
    %cst_13 = arith.constant 5.000000e+00 : f32
    %36 = vector.broadcast %cst_13 : f32 to vector<2x1xf32>
    %37 = arith.minimumf %35, %36 : vector<2x1xf32>
    %cst_14 = arith.constant dense<0.000000e+00> : vector<2xf32>
    %38 = vector.multi_reduction <add>, %6, %cst_14 [1] : vector<2x16xf32> to vector<2xf32>
    %39 = vector.shape_cast %38 : vector<2xf32> to vector<2x1xf32>
    %cst_15 = arith.constant 1.600000e+01 : f32
    %40 = vector.broadcast %cst_15 : f32 to vector<2x1xf32>
    %41 = arith.divf %39, %40 : vector<2x1xf32>
    %42 = arith.subf %41, %9 : vector<2x1xf32>
    %43 = math.log %14 : vector<2x1xf32>
    %44 = arith.subf %42, %43 : vector<2x1xf32>
    %45 = arith.mulf %37, %44 : vector<2x1xf32>
    %cst_16 = arith.constant 5.000000e-01 : f32
    %46 = vector.broadcast %cst_16 : f32 to vector<2x1xf32>
    %47 = arith.mulf %37, %46 : vector<2x1xf32>
    %cst_17 = arith.constant 6.250000e-02 : f32
    %48 = vector.broadcast %cst_17 : f32 to vector<2x16xf32>
    %49 = arith.subf %48, %17 : vector<2x16xf32>
    %50 = vector.broadcast %47 : vector<2x1xf32> to vector<2x16xf32>
    %51 = arith.mulf %50, %49 : vector<2x16xf32>
    %52 = arith.truncf %51 : vector<2x16xf32> to vector<2x16xbf16>
    %cst_18 = arith.constant dense<0.000000e+00> : vector<16x1024xf32>
    %53 = tpu.matmul %52, %1, %cst_18 {dimension_numbers = #tpu.dot_dimension_numbers<[0], [0], [1], [1], [0, 1, 1, 1], [], []>} : vector<2x16xbf16>, vector<2x1024xbf16>, vector<16x1024xf32> -> vector<16x1024xf32>
    %cst_19 = arith.constant dense<0.000000e+00> : vector<16xf32>
    %54 = vector.multi_reduction <add>, %51, %cst_19 [0] : vector<2x16xf32> to vector<16xf32>
    %55 = vector.shape_cast %54 : vector<16xf32> to vector<1x16xf32>
    %c0_i32 = arith.constant 0 : i32
    %56 = arith.cmpi eq, %arg1, %c0_i32 : i32
    %57 = arith.extui %56 : i1 to i32
    %c0_i32_20 = arith.constant 0 : i32
    %58 = arith.cmpi ne, %57, %c0_i32_20 : i32
    scf.if %58 {
      %cst_41 = arith.constant 0.000000e+00 : f32
      %81 = vector.broadcast %cst_41 : f32 to vector<1x1xf32>
      %c0_42 = arith.constant 0 : index
      %c0_43 = arith.constant 0 : index
      %c0_44 = arith.constant 0 : index
      %82 = vector.load %arg6[%c0_42, %c0_43, %c0_44] : memref<1x1x1xf32, #tpu.memory_space<vmem>>, vector<1x1x1xf32>
      %83 = vector.shape_cast %82 : vector<1x1x1xf32> to vector<1x1xf32>
      %84 = vector.shape_cast %81 : vector<1x1xf32> to vector<1x1x1xf32>
      tpu.vector_store %arg6[%c0_42, %c0_43, %c0_44], %84 {strides = array<i32>} : memref<1x1x1xf32, #tpu.memory_space<vmem>>, vector<1x1x1xf32>,
      %cst_45 = arith.constant 0.000000e+00 : f32
      %85 = vector.broadcast %cst_45 : f32 to vector<16x1024xf32>
      %c0_46 = arith.constant 0 : index
      %c0_47 = arith.constant 0 : index
      %c0_48 = arith.constant 0 : index
      %86 = vector.load %arg7[%c0_46, %c0_47, %c0_48] : memref<1x16x1024xf32, #tpu.memory_space<vmem>>, vector<1x16x1024xf32>
      %87 = vector.shape_cast %86 : vector<1x16x1024xf32> to vector<16x1024xf32>
      %88 = vector.shape_cast %85 : vector<16x1024xf32> to vector<1x16x1024xf32>
      tpu.vector_store %arg7[%c0_46, %c0_47, %c0_48], %88 {strides = array<i32>} : memref<1x16x1024xf32, #tpu.memory_space<vmem>>, vector<1x16x1024xf32>,
      %cst_49 = arith.constant 0.000000e+00 : f32
      %89 = vector.broadcast %cst_49 : f32 to vector<1x16xf32>
      %c0_50 = arith.constant 0 : index
      %c0_51 = arith.constant 0 : index
      %c0_52 = arith.constant 0 : index
      %90 = vector.load %arg8[%c0_50, %c0_51, %c0_52] : memref<1x1x16xf32, #tpu.memory_space<vmem>>, vector<1x1x16xf32>
      %91 = vector.shape_cast %90 : vector<1x1x16xf32> to vector<1x16xf32>
      %92 = vector.shape_cast %89 : vector<1x16xf32> to vector<1x1x16xf32>
      tpu.vector_store %arg8[%c0_50, %c0_51, %c0_52], %92 {strides = array<i32>} : memref<1x1x16xf32, #tpu.memory_space<vmem>>, vector<1x1x16xf32>,
    } else {
    }
    %c0_21 = arith.constant 0 : index
    %c0_22 = arith.constant 0 : index
    %c0_23 = arith.constant 0 : index
    %59 = vector.load %arg6[%c0_21, %c0_22, %c0_23] : memref<1x1x1xf32, #tpu.memory_space<vmem>>, vector<1x1x1xf32>
    %60 = vector.shape_cast %59 : vector<1x1x1xf32> to vector<1x1xf32>
    %cst_24 = arith.constant dense<0.000000e+00> : vector<1xf32>
    %61 = vector.multi_reduction <add>, %45, %cst_24 [0] : vector<2x1xf32> to vector<1xf32>
    %62 = vector.shape_cast %61 : vector<1xf32> to vector<1x1xf32>
    %cst_25 = arith.constant 5.000000e-01 : f32
    %63 = vector.broadcast %cst_25 : f32 to vector<1x1xf32>
    %64 = arith.mulf %63, %62 : vector<1x1xf32>
    %65 = arith.addf %60, %64 : vector<1x1xf32>
    %c0_26 = arith.constant 0 : index
    %c0_27 = arith.constant 0 : index
    %c0_28 = arith.constant 0 : index
    %66 = vector.load %arg6[%c0_26, %c0_27, %c0_28] : memref<1x1x1xf32, #tpu.memory_space<vmem>>, vector<1x1x1xf32>
    %67 = vector.shape_cast %66 : vector<1x1x1xf32> to vector<1x1xf32>
    %68 = vector.shape_cast %65 : vector<1x1xf32> to vector<1x1x1xf32>
    tpu.vector_store %arg6[%c0_26, %c0_27, %c0_28], %68 {strides = array<i32>} : memref<1x1x1xf32, #tpu.memory_space<vmem>>, vector<1x1x1xf32>,
    %c0_29 = arith.constant 0 : index
    %c0_30 = arith.constant 0 : index
    %c0_31 = arith.constant 0 : index
    %69 = vector.load %arg7[%c0_29, %c0_30, %c0_31] : memref<1x16x1024xf32, #tpu.memory_space<vmem>>, vector<1x16x1024xf32>
    %70 = vector.shape_cast %69 : vector<1x16x1024xf32> to vector<16x1024xf32>
    %71 = arith.addf %70, %53 : vector<16x1024xf32>
    %c0_32 = arith.constant 0 : index
    %c0_33 = arith.constant 0 : index
    %c0_34 = arith.constant 0 : index
    %72 = vector.load %arg7[%c0_32, %c0_33, %c0_34] : memref<1x16x1024xf32, #tpu.memory_space<vmem>>, vector<1x16x1024xf32>
    %73 = vector.shape_cast %72 : vector<1x16x1024xf32> to vector<16x1024xf32>
    %74 = vector.shape_cast %71 : vector<16x1024xf32> to vector<1x16x1024xf32>
    tpu.vector_store %arg7[%c0_32, %c0_33, %c0_34], %74 {strides = array<i32>} : memref<1x16x1024xf32, #tpu.memory_space<vmem>>, vector<1x16x1024xf32>,
    %c0_35 = arith.constant 0 : index
    %c0_36 = arith.constant 0 : index
    %c0_37 = arith.constant 0 : index
    %75 = vector.load %arg8[%c0_35, %c0_36, %c0_37] : memref<1x1x16xf32, #tpu.memory_space<vmem>>, vector<1x1x16xf32>
    %76 = vector.shape_cast %75 : vector<1x1x16xf32> to vector<1x16xf32>
    %77 = arith.addf %76, %55 : vector<1x16xf32>
    %c0_38 = arith.constant 0 : index
    %c0_39 = arith.constant 0 : index
    %c0_40 = arith.constant 0 : index
    %78 = vector.load %arg8[%c0_38, %c0_39, %c0_40] : memref<1x1x16xf32, #tpu.memory_space<vmem>>, vector<1x1x16xf32>
    %79 = vector.shape_cast %78 : vector<1x1x16xf32> to vector<1x16xf32>
    %80 = vector.shape_cast %77 : vector<1x16xf32> to vector<1x1x16xf32>
    tpu.vector_store %arg8[%c0_38, %c0_39, %c0_40], %80 {strides = array<i32>} : memref<1x1x16xf32, #tpu.memory_space<vmem>>, vector<1x1x16xf32>,
    return
  }
  func.func @transform_0(%arg0: i32, %arg1: i32) -> (i32, i32) {
    %c1_i32 = arith.constant 1 : i32
    %0 = arith.muli %arg0, %c1_i32 : i32
    %1 = arith.addi %0, %arg1 : i32
    %c0_i32 = arith.constant 0 : i32
    %c0_i32_0 = arith.constant 0 : i32
    return %1, %c0_i32 : i32, i32
  }
  func.func @transform_1(%arg0: i32, %arg1: i32) -> (i32, i32) {
    %c0_i32 = arith.constant 0 : i32
    %c0_i32_0 = arith.constant 0 : i32
    %c0_i32_1 = arith.constant 0 : i32
    return %c0_i32, %c0_i32_0 : i32, i32
  }
  func.func @transform_2(%arg0: i32, %arg1: i32) -> (i32, i32) {
    %c0_i32 = arith.constant 0 : i32
    %c0_i32_0 = arith.constant 0 : i32
    %c0_i32_1 = arith.constant 0 : i32
    return %c0_i32, %c0_i32_0 : i32, i32
  }
  func.func @transform_3(%arg0: i32, %arg1: i32) -> (i32, i32) {
    %c1_i32 = arith.constant 1 : i32
    %0 = arith.muli %arg0, %c1_i32 : i32
    %1 = arith.addi %0, %arg1 : i32
    %c0_i32 = arith.constant 0 : i32
    %c0_i32_0 = arith.constant 0 : i32
    return %1, %c0_i32 : i32, i32
  }
  func.func @transform_4(%arg0: i32, %arg1: i32) -> (i32, i32, i32) {
    %c0_i32 = arith.constant 0 : i32
    %c0_i32_0 = arith.constant 0 : i32
    %c0_i32_1 = arith.constant 0 : i32
    return %arg0, %c0_i32, %c0_i32_0 : i32, i32, i32
  }
  func.func @transform_5(%arg0: i32, %arg1: i32) -> (i32, i32, i32) {
    %c0_i32 = arith.constant 0 : i32
    %c0_i32_0 = arith.constant 0 : i32
    %c0_i32_1 = arith.constant 0 : i32
    return %arg0, %c0_i32, %c0_i32_0 : i32, i32, i32
  }
  func.func @transform_6(%arg0: i32, %arg1: i32) -> (i32, i32, i32) {
    %c0_i32 = arith.constant 0 : i32
    %c0_i32_0 = arith.constant 0 : i32
    %c0_i32_1 = arith.constant 0 : i32
    return %arg0, %c0_i32, %c0_i32_0 : i32, i32, i32
  }
}

</mosaic_0001>

<llo_original>
// kernel: cstta_forward.1
$region0: #{cstta_forward.1}
  #allocation0 [shape = 'u32[]', space=smem, size = 0x4, offset = 0x4, fixed_abs, tag = 'smem constant byte address 0x4 - core index']
  #allocation1 [shape = 'u32[72,128]{1,0:T(1,128)}', space=vmem, size = 0x9000, scoped, tag = 'internal scratch']
  %s0 = inlined_call_operand.vmem [shape: f32[2,1024], index: 0, kind: input, shape index: {}]
  %s1 = inlined_call_operand.vmem [shape: bf16[1024,16], index: 1, kind: input, shape index: {}]
  %s2 = inlined_call_operand.vmem [shape: f32[1,16], index: 2, kind: input, shape index: {}]
  %s3 = inlined_call_operand.hbm [shape: f32[2,16], index: 3, kind: output, shape index: {0}]
  %s4 = inlined_call_operand.hbm [shape: f32[1,1,1], index: 4, kind: output, shape index: {1}]
  %s5 = inlined_call_operand.vmem [shape: f32[1,16,1024], index: 5, kind: output, shape index: {2}]
  %s6 = inlined_call_operand.vmem [shape: f32[1,1,16], index: 6, kind: output, shape index: {3}]
  %7 = xla_tuple %s3, %s4, %s5, %s6
  %s8 = sld [smem:[#allocation0]]
  $region50: #{cstta_forward.1} parent=0
    _
  %s10 = ssub.s32 1, %s8
  %s11 = scalar_select 0, %s10, %s8
  $region1: #{cstta_forward.1} parent=0
    #allocation2 [shape = 'u8[1024]{0}', space=vmem, size = 0x400, scoped, tag = 'output window, operand 0, single buffered']
    #allocation3 [shape = 's32[1]{0}', space=sflag, size = 0x4, scoped, tag = 'scoped memory for cstta_forward.1']
    #allocation4 [shape = 'u8[512]{0}', space=vmem, size = 0x400, scoped, tag = 'output window, operand 1, single buffered']
    #allocation5 [shape = 's32[1]{0}', space=sflag, size = 0x4, scoped, tag = 'scoped memory for cstta_forward.1']
    %12 = vsyncpa [#allocation3], 0
    %13 = vsyncpa [#allocation5], 0
    // Predicated region
    $region2: #{cstta_forward.1} parent=1 // pred_check
      _
    $region3: #{cstta_forward.1} parent=1 // pred_check_branch
      %15 = sbr.rel (0) target = $region5
    $region4: #{cstta_forward.1} parent=1 // pred_region
      %s16 = sadd.s32 0, 0
      %p17 = scmp.lt.s32.totalorder %s16, 0
      %s18 = scalar_select %p17, %s16, 0
      %s19 = smul.addr %s18, 8
      %s20 = smul.addr %s19, 2
      %s21 = scalar_lea.vmem %s0, %s20
      %s22 = sadd.s32 0, 0
    $region5: #{cstta_forward.1} parent=1 // pred_fallthru
      _
    // Predicated region
    $region6: #{cstta_forward.1} parent=1 // pred_check
      _
    $region7: #{cstta_forward.1} parent=1 // pred_check_branch
      %24 = sbr.rel (0) target = $region9
    $region8: #{cstta_forward.1} parent=1 // pred_region
      _
    $region9: #{cstta_forward.1} parent=1 // pred_fallthru
      _
    // Predicated region
    $region10: #{cstta_forward.1} parent=1 // pred_check
      _
    $region11: #{cstta_forward.1} parent=1 // pred_check_branch
      %26 = sbr.rel (0) target = $region13
    $region12: #{cstta_forward.1} parent=1 // pred_region
      _
    $region13: #{cstta_forward.1} parent=1 // pred_fallthru
      _
    %s27 = sadd.s32 0, 0
    %p28 = scmp.lt.s32.totalorder %s27, 0
    %s29 = scalar_select %p28, %s27, 0
    %s30 = smul.addr %s29, 8
    %s31 = smul.addr %s30, 2
    %s32 = scalar_lea.vmem %s0, %s31
    %s33 = sadd.s32 0, 0
    %p34 = scmp.lt.s32.totalorder %s33, 0
    %s35 = scalar_select %p34, %s33, 0
    %s36 = smul.addr %s35, 8
    %s37 = smul.addr %s36, 2
    %s38 = scalar_lea.vmem %s0, %s37
    %s39 = sadd.s32 0, 0
    %s40 = sadd.s32 0, 0
    %v42 = vld [vmem:[%s38] sm:$0xff]
    %v43 = vld [vmem:[%s38 + $0x8] sm:$0xff]
    %46 = vst [vmem:[#allocation1] ss:$4 sm:$0xff] %v42
    %s47 = scalar_lea.vmem [#allocation1], 32
    %48 = vst [vmem:[%s47] ss:$4 sm:$0xff] %v43
    %v49 = vld.sshfl [vmem:[#allocation1] sm:$0xff pattern:$0x73625140]
    %v50 = vld.sshfl [vmem:[#allocation1 + $0x8] sm:$0xff pattern:$0x73625140]
    %v51 = vld.sshfl [vmem:[#allocation1 + $0x10] sm:$0xff pattern:$0x73625140]
    %v52 = vld.sshfl [vmem:[#allocation1 + $0x18] sm:$0xff pattern:$0x73625140]
    %v53 = vld.sshfl [vmem:[#allocation1 + $0x20] sm:$0xff pattern:$0x73625140]
    %v54 = vld.sshfl [vmem:[#allocation1 + $0x28] sm:$0xff pattern:$0x73625140]
    %v55 = vld.sshfl [vmem:[#allocation1 + $0x30] sm:$0xff pattern:$0x73625140]
    %v56 = vld.sshfl [vmem:[#allocation1 + $0x38] sm:$0xff pattern:$0x73625140]
    %v65 = vpack.c.bf16 %v49, %v49
    %v66 = vpack.c.bf16 %v50, %v50
    %v67 = vpack.c.bf16 %v51, %v51
    %v68 = vpack.c.bf16 %v52, %v52
    %v69 = vpack.c.bf16 %v53, %v53
    %v70 = vpack.c.bf16 %v54, %v54
    %v71 = vpack.c.bf16 %v55, %v55
    %v72 = vpack.c.bf16 %v56, %v56
    %v73 = vld [vmem:[%s1] sm:$0xf]
    %v74 = vld [vmem:[%s1 + $0x4] sm:$0xf]
    %v75 = vld [vmem:[%s1 + $0x8] sm:$0xf]
    %v76 = vld [vmem:[%s1 + $0xc] sm:$0xf]
    %v77 = vld [vmem:[%s1 + $0x10] sm:$0xf]
    %v78 = vld [vmem:[%s1 + $0x14] sm:$0xf]
    %v79 = vld [vmem:[%s1 + $0x18] sm:$0xf]
    %v80 = vld [vmem:[%s1 + $0x1c] sm:$0xf]
    %v81 = vld [vmem:[%s1 + $0x20] sm:$0xf]
    %v82 = vld [vmem:[%s1 + $0x24] sm:$0xf]
    %v83 = vld [vmem:[%s1 + $0x28] sm:$0xf]
    %v84 = vld [vmem:[%s1 + $0x2c] sm:$0xf]
    %v85 = vld [vmem:[%s1 + $0x30] sm:$0xf]
    %v86 = vld [vmem:[%s1 + $0x34] sm:$0xf]
    %v87 = vld [vmem:[%s1 + $0x38] sm:$0xf]
    %v88 = vld [vmem:[%s1 + $0x3c] sm:$0xf]
    %v89 = vld [vmem:[%s1 + $0x40] sm:$0xf]
    %v90 = vld [vmem:[%s1 + $0x44] sm:$0xf]
    %v91 = vld [vmem:[%s1 + $0x48] sm:$0xf]
    %v92 = vld [vmem:[%s1 + $0x4c] sm:$0xf]
    %v93 = vld [vmem:[%s1 + $0x50] sm:$0xf]
    %v94 = vld [vmem:[%s1 + $0x54] sm:$0xf]
    %v95 = vld [vmem:[%s1 + $0x58] sm:$0xf]
    %v96 = vld [vmem:[%s1 + $0x5c] sm:$0xf]
    %v97 = vld [vmem:[%s1 + $0x60] sm:$0xf]
    %v98 = vld [vmem:[%s1 + $0x64] sm:$0xf]
    %v99 = vld [vmem:[%s1 + $0x68] sm:$0xf]
    %v100 = vld [vmem:[%s1 + $0x6c] sm:$0xf]
    %v101 = vld [vmem:[%s1 + $0x70] sm:$0xf]
    %v102 = vld [vmem:[%s1 + $0x74] sm:$0xf]
    %v103 = vld [vmem:[%s1 + $0x78] sm:$0xf]
    %v104 = vld [vmem:[%s1 + $0x7c] sm:$0xf]
    %v105 = vld [vmem:[%s1 + $0x80] sm:$0xf]
    %v106 = vld [vmem:[%s1 + $0x84] sm:$0xf]
    %v107 = vld [vmem:[%s1 + $0x88] sm:$0xf]
    %v108 = vld [vmem:[%s1 + $0x8c] sm:$0xf]
    %v109 = vld [vmem:[%s1 + $0x90] sm:$0xf]
    %v110 = vld [vmem:[%s1 + $0x94] sm:$0xf]
    %v111 = vld [vmem:[%s1 + $0x98] sm:$0xf]
    %v112 = vld [vmem:[%s1 + $0x9c] sm:$0xf]
    %v113 = vld [vmem:[%s1 + $0xa0] sm:$0xf]
    %v114 = vld [vmem:[%s1 + $0xa4] sm:$0xf]
    %v115 = vld [vmem:[%s1 + $0xa8] sm:$0xf]
    %v116 = vld [vmem:[%s1 + $0xac] sm:$0xf]
    %v117 = vld [vmem:[%s1 + $0xb0] sm:$0xf]
    %v118 = vld [vmem:[%s1 + $0xb4] sm:$0xf]
    %v119 = vld [vmem:[%s1 + $0xb8] sm:$0xf]
    %v120 = vld [vmem:[%s1 + $0xbc] sm:$0xf]
    %v121 = vld [vmem:[%s1 + $0xc0] sm:$0xf]
    %v122 = vld [vmem:[%s1 + $0xc4] sm:$0xf]
    %v123 = vld [vmem:[%s1 + $0xc8] sm:$0xf]
    %v124 = vld [vmem:[%s1 + $0xcc] sm:$0xf]
    %v125 = vld [vmem:[%s1 + $0xd0] sm:$0xf]
    %v126 = vld [vmem:[%s1 + $0xd4] sm:$0xf]
    %v127 = vld [vmem:[%s1 + $0xd8] sm:$0xf]
    %v128 = vld [vmem:[%s1 + $0xdc] sm:$0xf]
    %v129 = vld [vmem:[%s1 + $0xe0] sm:$0xf]
    %v130 = vld [vmem:[%s1 + $0xe4] sm:$0xf]
    %v131 = vld [vmem:[%s1 + $0xe8] sm:$0xf]
    %v132 = vld [vmem:[%s1 + $0xec] sm:$0xf]
    %v133 = vld [vmem:[%s1 + $0xf0] sm:$0xf]
    %v134 = vld [vmem:[%s1 + $0xf4] sm:$0xf]
    %v135 = vld [vmem:[%s1 + $0xf8] sm:$0xf]
    %v136 = vld [vmem:[%s1 + $0xfc] sm:$0xf]
    %v137 = vld [vmem:[%s1 + $0x100] sm:$0xf]
    %v138 = vld [vmem:[%s1 + $0x104] sm:$0xf]
    %v139 = vld [vmem:[%s1 + $0x108] sm:$0xf]
    %v140 = vld [vmem:[%s1 + $0x10c] sm:$0xf]
    %v141 = vld [vmem:[%s1 + $0x110] sm:$0xf]
    %v142 = vld [vmem:[%s1 + $0x114] sm:$0xf]
    %v143 = vld [vmem:[%s1 + $0x118] sm:$0xf]
    %v144 = vld [vmem:[%s1 + $0x11c] sm:$0xf]
    %v145 = vld [vmem:[%s1 + $0x120] sm:$0xf]
    %v146 = vld [vmem:[%s1 + $0x124] sm:$0xf]
    %v147 = vld [vmem:[%s1 + $0x128] sm:$0xf]
    %v148 = vld [vmem:[%s1 + $0x12c] sm:$0xf]
    %v149 = vld [vmem:[%s1 + $0x130] sm:$0xf]
    %v150 = vld [vmem:[%s1 + $0x134] sm:$0xf]
    %v151 = vld [vmem:[%s1 + $0x138] sm:$0xf]
    %v152 = vld [vmem:[%s1 + $0x13c] sm:$0xf]
    %v153 = vld [vmem:[%s1 + $0x140] sm:$0xf]
    %v154 = vld [vmem:[%s1 + $0x144] sm:$0xf]
    %v155 = vld [vmem:[%s1 + $0x148] sm:$0xf]
    %v156 = vld [vmem:[%s1 + $0x14c] sm:$0xf]
    %v157 = vld [vmem:[%s1 + $0x150] sm:$0xf]
    %v158 = vld [vmem:[%s1 + $0x154] sm:$0xf]
    %v159 = vld [vmem:[%s1 + $0x158] sm:$0xf]
    %v160 = vld [vmem:[%s1 + $0x15c] sm:$0xf]
    %v161 = vld [vmem:[%s1 + $0x160] sm:$0xf]
    %v162 = vld [vmem:[%s1 + $0x164] sm:$0xf]
    %v163 = vld [vmem:[%s1 + $0x168] sm:$0xf]
    %v164 = vld [vmem:[%s1 + $0x16c] sm:$0xf]
    %v165 = vld [vmem:[%s1 + $0x170] sm:$0xf]
    %v166 = vld [vmem:[%s1 + $0x174] sm:$0xf]
    %v167 = vld [vmem:[%s1 + $0x178] sm:$0xf]
    %v168 = vld [vmem:[%s1 + $0x17c] sm:$0xf]
    %v169 = vld [vmem:[%s1 + $0x180] sm:$0xf]
    %v170 = vld [vmem:[%s1 + $0x184] sm:$0xf]
    %v171 = vld [vmem:[%s1 + $0x188] sm:$0xf]
    %v172 = vld [vmem:[%s1 + $0x18c] sm:$0xf]
    %v173 = vld [vmem:[%s1 + $0x190] sm:$0xf]
    %v174 = vld [vmem:[%s1 + $0x194] sm:$0xf]
    %v175 = vld [vmem:[%s1 + $0x198] sm:$0xf]
    %v176 = vld [vmem:[%s1 + $0x19c] sm:$0xf]
    %v177 = vld [vmem:[%s1 + $0x1a0] sm:$0xf]
    %v178 = vld [vmem:[%s1 + $0x1a4] sm:$0xf]
    %v179 = vld [vmem:[%s1 + $0x1a8] sm:$0xf]
    %v180 = vld [vmem:[%s1 + $0x1ac] sm:$0xf]
    %v181 = vld [vmem:[%s1 + $0x1b0] sm:$0xf]
    %v182 = vld [vmem:[%s1 + $0x1b4] sm:$0xf]
    %v183 = vld [vmem:[%s1 + $0x1b8] sm:$0xf]
    %v184 = vld [vmem:[%s1 + $0x1bc] sm:$0xf]
    %v185 = vld [vmem:[%s1 + $0x1c0] sm:$0xf]
    %v186 = vld [vmem:[%s1 + $0x1c4] sm:$0xf]
    %v187 = vld [vmem:[%s1 + $0x1c8] sm:$0xf]
    %v188 = vld [vmem:[%s1 + $0x1cc] sm:$0xf]
    %v189 = vld [vmem:[%s1 + $0x1d0] sm:$0xf]
    %v190 = vld [vmem:[%s1 + $0x1d4] sm:$0xf]
    %v191 = vld [vmem:[%s1 + $0x1d8] sm:$0xf]
    %v192 = vld [vmem:[%s1 + $0x1dc] sm:$0xf]
    %v193 = vld [vmem:[%s1 + $0x1e0] sm:$0xf]
    %v194 = vld [vmem:[%s1 + $0x1e4] sm:$0xf]
    %v195 = vld [vmem:[%s1 + $0x1e8] sm:$0xf]
    %v196 = vld [vmem:[%s1 + $0x1ec] sm:$0xf]
    %v197 = vld [vmem:[%s1 + $0x1f0] sm:$0xf]
    %v198 = vld [vmem:[%s1 + $0x1f4] sm:$0xf]
    %v199 = vld [vmem:[%s1 + $0x1f8] sm:$0xf]
    %v200 = vld [vmem:[%s1 + $0x1fc] sm:$0xf]
    %v201 = vld [vmem:[%s2] sm:$0x1]
    %v203 = vperm.slane %v201, 0
    %v333 = vunpack.c.l.b16 %v73
    %v334 = vunpack.c.l.b16 %v74
    %v335 = vunpack.c.l.b16 %v75
    %v336 = vunpack.c.l.b16 %v76
    %v337 = vunpack.c.l.b16 %v77
    %v338 = vunpack.c.l.b16 %v78
    %v339 = vunpack.c.l.b16 %v79
    %v340 = vunpack.c.l.b16 %v80
    %v341 = vunpack.c.l.b16 %v81
    %v342 = vunpack.c.l.b16 %v82
    %v343 = vunpack.c.l.b16 %v83
    %v344 = vunpack.c.l.b16 %v84
    %v345 = vunpack.c.l.b16 %v85
    %v346 = vunpack.c.l.b16 %v86
    %v347 = vunpack.c.l.b16 %v87
    %v348 = vunpack.c.l.b16 %v88
    %v349 = vunpack.c.l.b16 %v89
    %v350 = vunpack.c.l.b16 %v90
    %v351 = vunpack.c.l.b16 %v91
    %v352 = vunpack.c.l.b16 %v92
    %v353 = vunpack.c.l.b16 %v93
    %v354 = vunpack.c.l.b16 %v94
    %v355 = vunpack.c.l.b16 %v95
    %v356 = vunpack.c.l.b16 %v96
    %v357 = vunpack.c.l.b16 %v97
    %v358 = vunpack.c.l.b16 %v98
    %v359 = vunpack.c.l.b16 %v99
    %v360 = vunpack.c.l.b16 %v100
    %v361 = vunpack.c.l.b16 %v101
    %v362 = vunpack.c.l.b16 %v102
    %v363 = vunpack.c.l.b16 %v103
    %v364 = vunpack.c.l.b16 %v104
    %v365 = vunpack.c.l.b16 %v105
    %v366 = vunpack.c.l.b16 %v106
    %v367 = vunpack.c.l.b16 %v107
    %v368 = vunpack.c.l.b16 %v108
    %v369 = vunpack.c.l.b16 %v109
    %v370 = vunpack.c.l.b16 %v110
    %v371 = vunpack.c.l.b16 %v111
    %v372 = vunpack.c.l.b16 %v112
    %v373 = vunpack.c.l.b16 %v113
    %v374 = vunpack.c.l.b16 %v114
    %v375 = vunpack.c.l.b16 %v115
    %v376 = vunpack.c.l.b16 %v116
    %v377 = vunpack.c.l.b16 %v117
    %v378 = vunpack.c.l.b16 %v118
    %v379 = vunpack.c.l.b16 %v119
    %v380 = vunpack.c.l.b16 %v120
    %v381 = vunpack.c.l.b16 %v121
    %v382 = vunpack.c.l.b16 %v122
    %v383 = vunpack.c.l.b16 %v123
    %v384 = vunpack.c.l.b16 %v124
    %v385 = vunpack.c.l.b16 %v125
    %v386 = vunpack.c.l.b16 %v126
    %v387 = vunpack.c.l.b16 %v127
    %v388 = vunpack.c.l.b16 %v128
    %v389 = vunpack.c.l.b16 %v129
    %v390 = vunpack.c.l.b16 %v130
    %v391 = vunpack.c.l.b16 %v131
    %v392 = vunpack.c.l.b16 %v132
    %v393 = vunpack.c.l.b16 %v133
    %v394 = vunpack.c.l.b16 %v134
    %v395 = vunpack.c.l.b16 %v135
    %v396 = vunpack.c.l.b16 %v136
    %v397 = vunpack.c.l.b16 %v137
    %v398 = vunpack.c.l.b16 %v138
    %v399 = vunpack.c.l.b16 %v139
    %v400 = vunpack.c.l.b16 %v140
    %v401 = vunpack.c.l.b16 %v141
    %v402 = vunpack.c.l.b16 %v142
    %v403 = vunpack.c.l.b16 %v143
    %v404 = vunpack.c.l.b16 %v144
    %v405 = vunpack.c.l.b16 %v145
    %v406 = vunpack.c.l.b16 %v146
    %v407 = vunpack.c.l.b16 %v147
    %v408 = vunpack.c.l.b16 %v148
    %v409 = vunpack.c.l.b16 %v149
    %v410 = vunpack.c.l.b16 %v150
    %v411 = vunpack.c.l.b16 %v151
    %v412 = vunpack.c.l.b16 %v152
    %v413 = vunpack.c.l.b16 %v153
    %v414 = vunpack.c.l.b16 %v154
    %v415 = vunpack.c.l.b16 %v155
    %v416 = vunpack.c.l.b16 %v156
    %v417 = vunpack.c.l.b16 %v157
    %v418 = vunpack.c.l.b16 %v158
    %v419 = vunpack.c.l.b16 %v159
    %v420 = vunpack.c.l.b16 %v160
    %v421 = vunpack.c.l.b16 %v161
    %v422 = vunpack.c.l.b16 %v162
    %v423 = vunpack.c.l.b16 %v163
    %v424 = vunpack.c.l.b16 %v164
    %v425 = vunpack.c.l.b16 %v165
    %v426 = vunpack.c.l.b16 %v166
    %v427 = vunpack.c.l.b16 %v167
    %v428 = vunpack.c.l.b16 %v168
    %v429 = vunpack.c.l.b16 %v169
    %v430 = vunpack.c.l.b16 %v170
    %v431 = vunpack.c.l.b16 %v171
    %v432 = vunpack.c.l.b16 %v172
    %v433 = vunpack.c.l.b16 %v173
    %v434 = vunpack.c.l.b16 %v174
    %v435 = vunpack.c.l.b16 %v175
    %v436 = vunpack.c.l.b16 %v176
    %v437 = vunpack.c.l.b16 %v177
    %v438 = vunpack.c.l.b16 %v178
    %v439 = vunpack.c.l.b16 %v179
    %v440 = vunpack.c.l.b16 %v180
    %v441 = vunpack.c.l.b16 %v181
    %v442 = vunpack.c.l.b16 %v182
    %v443 = vunpack.c.l.b16 %v183
    %v444 = vunpack.c.l.b16 %v184
    %v445 = vunpack.c.l.b16 %v185
    %v446 = vunpack.c.l.b16 %v186
    %v447 = vunpack.c.l.b16 %v187
    %v448 = vunpack.c.l.b16 %v188
    %v449 = vunpack.c.l.b16 %v189
    %v450 = vunpack.c.l.b16 %v190
    %v451 = vunpack.c.l.b16 %v191
    %v452 = vunpack.c.l.b16 %v192
    %v453 = vunpack.c.l.b16 %v193
    %v454 = vunpack.c.l.b16 %v194
    %v455 = vunpack.c.l.b16 %v195
    %v456 = vunpack.c.l.b16 %v196
    %v457 = vunpack.c.l.b16 %v197
    %v458 = vunpack.c.l.b16 %v198
    %v459 = vunpack.c.l.b16 %v199
    %v460 = vunpack.c.l.b16 %v200
    %v461 = vpack.c.b16 %v334, %v333
    %v462 = vpack.c.b16 %v336, %v335
    %v463 = vpack.c.b16 %v338, %v337
    %v464 = vpack.c.b16 %v340, %v339
    %v465 = vpack.c.b16 %v342, %v341
    %v466 = vpack.c.b16 %v344, %v343
    %v467 = vpack.c.b16 %v346, %v345
    %v468 = vpack.c.b16 %v348, %v347
    %v469 = vpack.c.b16 %v350, %v349
    %v470 = vpack.c.b16 %v352, %v351
    %v471 = vpack.c.b16 %v354, %v353
    %v472 = vpack.c.b16 %v356, %v355
    %v473 = vpack.c.b16 %v358, %v357
    %v474 = vpack.c.b16 %v360, %v359
    %v475 = vpack.c.b16 %v362, %v361
    %v476 = vpack.c.b16 %v364, %v363
    %v477 = vpack.c.b16 %v366, %v365
    %v478 = vpack.c.b16 %v368, %v367
    %v479 = vpack.c.b16 %v370, %v369
    %v480 = vpack.c.b16 %v372, %v371
    %v481 = vpack.c.b16 %v374, %v373
    %v482 = vpack.c.b16 %v376, %v375
    %v483 = vpack.c.b16 %v378, %v377
    %v484 = vpack.c.b16 %v380, %v379
    %v485 = vpack.c.b16 %v382, %v381
    %v486 = vpack.c.b16 %v384, %v383
    %v487 = vpack.c.b16 %v386, %v385
    %v488 = vpack.c.b16 %v388, %v387
    %v489 = vpack.c.b16 %v390, %v389
    %v490 = vpack.c.b16 %v392, %v391
    %v491 = vpack.c.b16 %v394, %v393
    %v492 = vpack.c.b16 %v396, %v395
    %v493 = vpack.c.b16 %v398, %v397
    %v494 = vpack.c.b16 %v400, %v399
    %v495 = vpack.c.b16 %v402, %v401
    %v496 = vpack.c.b16 %v404, %v403
    %v497 = vpack.c.b16 %v406, %v405
    %v498 = vpack.c.b16 %v408, %v407
    %v499 = vpack.c.b16 %v410, %v409
    %v500 = vpack.c.b16 %v412, %v411
    %v501 = vpack.c.b16 %v414, %v413
    %v502 = vpack.c.b16 %v416, %v415
    %v503 = vpack.c.b16 %v418, %v417
    %v504 = vpack.c.b16 %v420, %v419
    %v505 = vpack.c.b16 %v422, %v421
    %v506 = vpack.c.b16 %v424, %v423
    %v507 = vpack.c.b16 %v426, %v425
    %v508 = vpack.c.b16 %v428, %v427
    %v509 = vpack.c.b16 %v430, %v429
    %v510 = vpack.c.b16 %v432, %v431
    %v511 = vpack.c.b16 %v434, %v433
    %v512 = vpack.c.b16 %v436, %v435
    %v513 = vpack.c.b16 %v438, %v437
    %v514 = vpack.c.b16 %v440, %v439
    %v515 = vpack.c.b16 %v442, %v441
    %v516 = vpack.c.b16 %v444, %v443
    %v517 = vpack.c.b16 %v446, %v445
    %v518 = vpack.c.b16 %v448, %v447
    %v519 = vpack.c.b16 %v450, %v449
    %v520 = vpack.c.b16 %v452, %v451
    %v521 = vpack.c.b16 %v454, %v453
    %v522 = vpack.c.b16 %v456, %v455
    %v523 = vpack.c.b16 %v458, %v457
    %v524 = vpack.c.b16 %v460, %v459
    %589 = vmatpush.bf16.msra.mxu0 %v468
    %590 = vmatpush.bf16.msra.mxu0 %v467
    %591 = vmatpush.bf16.msra.mxu0 %v466
    %592 = vmatpush.bf16.msra.mxu0 %v465
    %593 = vmatpush.bf16.msra.mxu0 %v464
    %594 = vmatpush.bf16.msra.mxu0 %v463
    %595 = vmatpush.bf16.msra.mxu0 %v462
    %596 = vmatpush.bf16.msra.mxu0 %v461
    %597 = vmatmul.bf16.gmra.mxu0 %v65
    %v598 = vpop.f32.mrf.mxu0
    %v599 = vadd.f32 %v203, %v598
    %v600 = vpop.f32.mrf.mxu0
    %601 = vdwg.mxu0
    %602 = vmatpush.bf16.msra.mxu0 %v476
    %603 = vmatpush.bf16.msra.mxu0 %v475
    %604 = vmatpush.bf16.msra.mxu0 %v474
    %605 = vmatpush.bf16.msra.mxu0 %v473
    %606 = vmatpush.bf16.msra.mxu0 %v472
    %607 = vmatpush.bf16.msra.mxu0 %v471
    %608 = vmatpush.bf16.msra.mxu0 %v470
    %609 = vmatpush.bf16.msra.mxu0 %v469
    %610 = vmatmul.bf16.gmra.mxu0 %v66
    %v611 = vpop.f32.mrf.mxu0
    %v612 = vadd.f32 %v599, %v611
    %v613 = vpop.f32.mrf.mxu0
    %614 = vdwg.mxu0
    %615 = vmatpush.bf16.msra.mxu0 %v484
    %616 = vmatpush.bf16.msra.mxu0 %v483
    %617 = vmatpush.bf16.msra.mxu0 %v482
    %618 = vmatpush.bf16.msra.mxu0 %v481
    %619 = vmatpush.bf16.msra.mxu0 %v480
    %620 = vmatpush.bf16.msra.mxu0 %v479
    %621 = vmatpush.bf16.msra.mxu0 %v478
    %622 = vmatpush.bf16.msra.mxu0 %v477
    %623 = vmatmul.bf16.gmra.mxu0 %v67
    %v624 = vpop.f32.mrf.mxu0
    %v625 = vadd.f32 %v612, %v624
    %v626 = vpop.f32.mrf.mxu0
    %627 = vdwg.mxu0
    %628 = vmatpush.bf16.msra.mxu0 %v492
    %629 = vmatpush.bf16.msra.mxu0 %v491
    %630 = vmatpush.bf16.msra.mxu0 %v490
    %631 = vmatpush.bf16.msra.mxu0 %v489
    %632 = vmatpush.bf16.msra.mxu0 %v488
    %633 = vmatpush.bf16.msra.mxu0 %v487
    %634 = vmatpush.bf16.msra.mxu0 %v486
    %635 = vmatpush.bf16.msra.mxu0 %v485
    %636 = vmatmul.bf16.gmra.mxu0 %v68
    %v637 = vpop.f32.mrf.mxu0
    %v638 = vadd.f32 %v625, %v637
    %v639 = vpop.f32.mrf.mxu0
    %640 = vdwg.mxu0
    %641 = vmatpush.bf16.msra.mxu0 %v500
    %642 = vmatpush.bf16.msra.mxu0 %v499
    %643 = vmatpush.bf16.msra.mxu0 %v498
    %644 = vmatpush.bf16.msra.mxu0 %v497
    %645 = vmatpush.bf16.msra.mxu0 %v496
    %646 = vmatpush.bf16.msra.mxu0 %v495
    %647 = vmatpush.bf16.msra.mxu0 %v494
    %648 = vmatpush.bf16.msra.mxu0 %v493
    %649 = vmatmul.bf16.gmra.mxu0 %v69
    %v650 = vpop.f32.mrf.mxu0
    %v651 = vadd.f32 %v638, %v650
    %v652 = vpop.f32.mrf.mxu0
    %653 = vdwg.mxu0
    %654 = vmatpush.bf16.msra.mxu0 %v508
    %655 = vmatpush.bf16.msra.mxu0 %v507
    %656 = vmatpush.bf16.msra.mxu0 %v506
    %657 = vmatpush.bf16.msra.mxu0 %v505
    %658 = vmatpush.bf16.msra.mxu0 %v504
    %659 = vmatpush.bf16.msra.mxu0 %v503
    %660 = vmatpush.bf16.msra.mxu0 %v502
    %661 = vmatpush.bf16.msra.mxu0 %v501
    %662 = vmatmul.bf16.gmra.mxu0 %v70
    %v663 = vpop.f32.mrf.mxu0
    %v664 = vadd.f32 %v651, %v663
    %v665 = vpop.f32.mrf.mxu0
    %666 = vdwg.mxu0
    %667 = vmatpush.bf16.msra.mxu0 %v516
    %668 = vmatpush.bf16.msra.mxu0 %v515
    %669 = vmatpush.bf16.msra.mxu0 %v514
    %670 = vmatpush.bf16.msra.mxu0 %v513
    %671 = vmatpush.bf16.msra.mxu0 %v512
    %672 = vmatpush.bf16.msra.mxu0 %v511
    %673 = vmatpush.bf16.msra.mxu0 %v510
    %674 = vmatpush.bf16.msra.mxu0 %v509
    %675 = vmatmul.bf16.gmra.mxu0 %v71
    %v676 = vpop.f32.mrf.mxu0
    %v677 = vadd.f32 %v664, %v676
    %v678 = vpop.f32.mrf.mxu0
    %679 = vdwg.mxu0
    %680 = vmatpush.bf16.msra.mxu0 %v524
    %681 = vmatpush.bf16.msra.mxu0 %v523
    %682 = vmatpush.bf16.msra.mxu0 %v522
    %683 = vmatpush.bf16.msra.mxu0 %v521
    %684 = vmatpush.bf16.msra.mxu0 %v520
    %685 = vmatpush.bf16.msra.mxu0 %v519
    %686 = vmatpush.bf16.msra.mxu0 %v518
    %687 = vmatpush.bf16.msra.mxu0 %v517
    %688 = vmatmul.bf16.gmra.mxu0 %v72
    %v689 = vpop.f32.mrf.mxu0
    %v690 = vadd.f32 %v677, %v689
    %v691 = vpop.f32.mrf.mxu0
    %692 = vdwg.mxu0
    %vm693 = vcmask 123904
    %694 = vst.msk [vmem:[#allocation2] sm:$0x3] %vm693, %v690
    %v695 = vsel %vm693, %v690, -inf
    %696 = vmax.xlane.f32.xlu0 %v695
    %v697 = vpop.xlane.xlu0 %696
    %v698 = vsub.f32 %v690, %v697
    %v699 = vmul.f32 %v698, 1.442695
    %v700 = vpow.pop %v699
    %v701 = vsel %vm693, %v700, 0.0
    %702 = vadd.xlane.f32.xlu0 %v701
    %v703 = vpop.xlane.xlu0 %702
    %v704 = vrcp.pop %v703
    %v705 = vmul.f32 %v700, %v704
    %v706 = vlaneseq
    %v707 = vand.u32 %v706, 127
    %vm708 = vcmp.eq.f32.partialorder %v690, %v697
    %v709 = vsel %vm708, %v707, 16
    %v710 = vsel %vm693, %v709, 2147483647
    %v711 = vand.u32 %v710, 65535
    %v712 = vshra.s32 %v710, 16
    %v713 = vcvt.s32.f32 %v711
    %v714 = vcvt.s32.f32 %v712
    %715 = vmin.xlane.f32.xlu0 %v714
    %v716 = vpop.xlane.xlu0 %715
    %vm717 = vcmp.eq.f32.partialorder %v714, %v716
    %v718 = vsel %vm717, %v713, inf
    %719 = vmin.xlane.f32.xlu0 %v718
    %v720 = vpop.xlane.xlu0 %719
    %v721 = vcvt.f32.s32 %v720
    %v722 = vcvt.f32.s32 %v716
    %v723 = vshll.u32 %v722, 16
    %v724 = vadd.s32 %v723, %v721
    %vm725 = vcmp.eq.s32.totalorder %v707, %v724
    %v726 = vsel %vm725, -inf, %v690
    %v727 = vsel %vm693, %v726, -inf
    %728 = vmax.xlane.f32.xlu0 %v727
    %v729 = vpop.xlane.xlu0 %728
    %v730 = vsub.f32 %v729, %v697
    %v731 = vmul.f32 %v730, 1.442695
    %v732 = vpow.pop %v731
    %v733 = vsub.f32 1.0, %v732
    %v734 = vrcp.pop %v733
    %v735 = vmul.f32 %v733, %v734
    %v736 = vsub.f32 1.0, %v735
    %v737 = vmul.f32 %v734, %v736
    %v738 = vadd.f32 %v734, %v737
    %vm739 = vweird.f32 %v733
    %vm740 = vweird.f32 %v734
    %vm741 = vmor %vm739, %vm740
    %v742 = vsel %vm741, %v734, %v738
    %v743 = vand.u32 2147483647, %v733
    %vm744 = vcmp.eq.f32.partialorder %v743, 8.507059e+37
    %v745 = vand.u32 %v733, 2147483648
    %v746 = vor.u32 1.1754944e-38, %v745
    %v747 = vsel %vm744, %v746, %v742
    %v748 = vmul.f32 %v703, %v747
    %v749 = vmin.f32 %v748, 5.0
    %v750 = vsel %vm693, %v690, 0.0
    %751 = vadd.xlane.f32.xlu0 %v750
    %v752 = vpop.xlane.xlu0 %751
    %v753 = vrcp.pop 16.0
    %v754 = vmul.f32 16.0, %v753
    %v755 = vsub.f32 1.0, %v754
    %v756 = vmul.f32 %v753, %v755
    %v757 = vadd.f32 %v753, %v756
    %vm758 = vweird.f32 %v753
    %v759 = vsel %vm758, %v753, %v757
    %v760 = vmul.f32 %v752, %v759
    %v761 = vsub.f32 %v760, %v697
    %v762 = vlog2.pop %v703
    %v763 = vmul.f32 %v762, 0.6931472
    %v764 = vsub.f32 %v761, %v763
    %v765 = vmul.f32 %v749, %v764
    %v766 = vmul.f32 %v749, 0.5
    %v767 = vsub.f32 0.0625, %v705
    %v768 = vmul.f32 %v766, %v767
    %v769 = vpack.c.bf16 %v768, %v768
    %770 = vxpose.xlu0.c.b16.start [1/8] %v769, 128
    %771 = vxpose.xlu0.c.b16.cont [2/8] 0, 128
    %772 = vxpose.xlu0.c.b16.cont [3/8] 0, 128
    %773 = vxpose.xlu0.c.b16.cont [4/8] 0, 128
    %774 = vxpose.xlu0.c.b16.cont [5/8] 0, 128
    %775 = vxpose.xlu0.c.b16.cont [6/8] 0, 128
    %776 = vxpose.xlu0.c.b16.cont [7/8] 0, 128
    %777 = vxpose.xlu0.c.b16.end [8/8] 0, 128
    %v778 = vpop.trf.xlu0
    %v779 = vpop.trf.xlu0
    %v780 = vpop.trf.xlu0
    %v781 = vpop.trf.xlu0
    %v782 = vpop.trf.xlu0
    %v783 = vpop.trf.xlu0
    %v784 = vpop.trf.xlu0
    %v785 = vpop.trf.xlu0
    %vm786 = vcmask 15360
    %v788 = vsel %vm786, %v778, 0
    %vm790 = vcmask 1040384
    %v792 = vsel %vm790, %v65, 0
    %v795 = vsel %vm790, %v66, 0
    %v798 = vsel %vm790, %v67, 0
    %v801 = vsel %vm790, %v68, 0
    %v804 = vsel %vm790, %v69, 0
    %v807 = vsel %vm790, %v70, 0
    %v810 = vsel %vm790, %v71, 0
    %v813 = vsel %vm790, %v72, 0
    %815 = vmatpush.bf16.msra.mxu0 0
    %816 = vmatpush.bf16.msra.mxu0 0
    %817 = vmatpush.bf16.msra.mxu0 0
    %818 = vmatpush.bf16.msra.mxu0 0
    %819 = vmatpush.bf16.msra.mxu0 0
    %820 = vmatpush.bf16.msra.mxu0 0
    %821 = vmatpush.bf16.msra.mxu0 0
    %822 = vmatpush.bf16.msra.mxu0 %v792
    %823 = vmatmul.bf16.gmra.mxu0 %v788
    %v824 = vpop.f32.mrf.mxu0
    %v825 = vadd.f32 0.0, %v824
    %v826 = vpop.f32.mrf.mxu0
    %v827 = vadd.f32 0.0, %v826
    %828 = vdwg.mxu0
    %829 = vmatpush.bf16.msra.mxu0 0
    %830 = vmatpush.bf16.msra.mxu0 0
    %831 = vmatpush.bf16.msra.mxu0 0
    %832 = vmatpush.bf16.msra.mxu0 0
    %833 = vmatpush.bf16.msra.mxu0 0
    %834 = vmatpush.bf16.msra.mxu0 0
    %835 = vmatpush.bf16.msra.mxu0 0
    %836 = vmatpush.bf16.msra.mxu0 %v795
    %837 = vmatmul.bf16.gmra.mxu0 %v788
    %v838 = vpop.f32.mrf.mxu0
    %v839 = vadd.f32 0.0, %v838
    %v840 = vpop.f32.mrf.mxu0
    %v841 = vadd.f32 0.0, %v840
    %842 = vdwg.mxu0
    %843 = vmatpush.bf16.msra.mxu0 0
    %844 = vmatpush.bf16.msra.mxu0 0
    %845 = vmatpush.bf16.msra.mxu0 0
    %846 = vmatpush.bf16.msra.mxu0 0
    %847 = vmatpush.bf16.msra.mxu0 0
    %848 = vmatpush.bf16.msra.mxu0 0
    %849 = vmatpush.bf16.msra.mxu0 0
    %850 = vmatpush.bf16.msra.mxu0 %v798
    %851 = vmatmul.bf16.gmra.mxu0 %v788
    %v852 = vpop.f32.mrf.mxu0
    %v853 = vadd.f32 0.0, %v852
    %v854 = vpop.f32.mrf.mxu0
    %v855 = vadd.f32 0.0, %v854
    %856 = vdwg.mxu0
    %857 = vmatpush.bf16.msra.mxu0 0
    %858 = vmatpush.bf16.msra.mxu0 0
    %859 = vmatpush.bf16.msra.mxu0 0
    %860 = vmatpush.bf16.msra.mxu0 0
    %861 = vmatpush.bf16.msra.mxu0 0
    %862 = vmatpush.bf16.msra.mxu0 0
    %863 = vmatpush.bf16.msra.mxu0 0
    %864 = vmatpush.bf16.msra.mxu0 %v801
    %865 = vmatmul.bf16.gmra.mxu0 %v788
    %v866 = vpop.f32.mrf.mxu0
    %v867 = vadd.f32 0.0, %v866
    %v868 = vpop.f32.mrf.mxu0
    %v869 = vadd.f32 0.0, %v868
    %870 = vdwg.mxu0
    %871 = vmatpush.bf16.msra.mxu0 0
    %872 = vmatpush.bf16.msra.mxu0 0
    %873 = vmatpush.bf16.msra.mxu0 0
    %874 = vmatpush.bf16.msra.mxu0 0
    %875 = vmatpush.bf16.msra.mxu0 0
    %876 = vmatpush.bf16.msra.mxu0 0
    %877 = vmatpush.bf16.msra.mxu0 0
    %878 = vmatpush.bf16.msra.mxu0 %v804
    %879 = vmatmul.bf16.gmra.mxu0 %v788
    %v880 = vpop.f32.mrf.mxu0
    %v881 = vadd.f32 0.0, %v880
    %v882 = vpop.f32.mrf.mxu0
    %v883 = vadd.f32 0.0, %v882
    %884 = vdwg.mxu0
    %885 = vmatpush.bf16.msra.mxu0 0
    %886 = vmatpush.bf16.msra.mxu0 0
    %887 = vmatpush.bf16.msra.mxu0 0
    %888 = vmatpush.bf16.msra.mxu0 0
    %889 = vmatpush.bf16.msra.mxu0 0
    %890 = vmatpush.bf16.msra.mxu0 0
    %891 = vmatpush.bf16.msra.mxu0 0
    %892 = vmatpush.bf16.msra.mxu0 %v807
    %893 = vmatmul.bf16.gmra.mxu0 %v788
    %v894 = vpop.f32.mrf.mxu0
    %v895 = vadd.f32 0.0, %v894
    %v896 = vpop.f32.mrf.mxu0
    %v897 = vadd.f32 0.0, %v896
    %898 = vdwg.mxu0
    %899 = vmatpush.bf16.msra.mxu0 0
    %900 = vmatpush.bf16.msra.mxu0 0
    %901 = vmatpush.bf16.msra.mxu0 0
    %902 = vmatpush.bf16.msra.mxu0 0
    %903 = vmatpush.bf16.msra.mxu0 0
    %904 = vmatpush.bf16.msra.mxu0 0
    %905 = vmatpush.bf16.msra.mxu0 0
    %906 = vmatpush.bf16.msra.mxu0 %v810
    %907 = vmatmul.bf16.gmra.mxu0 %v788
    %v908 = vpop.f32.mrf.mxu0
    %v909 = vadd.f32 0.0, %v908
    %v910 = vpop.f32.mrf.mxu0
    %v911 = vadd.f32 0.0, %v910
    %912 = vdwg.mxu0
    %913 = vmatpush.bf16.msra.mxu0 0
    %914 = vmatpush.bf16.msra.mxu0 0
    %915 = vmatpush.bf16.msra.mxu0 0
    %916 = vmatpush.bf16.msra.mxu0 0
    %917 = vmatpush.bf16.msra.mxu0 0
    %918 = vmatpush.bf16.msra.mxu0 0
    %919 = vmatpush.bf16.msra.mxu0 0
    %920 = vmatpush.bf16.msra.mxu0 %v813
    %921 = vmatmul.bf16.gmra.mxu0 %v788
    %v922 = vpop.f32.mrf.mxu0
    %v923 = vadd.f32 0.0, %v922
    %v924 = vpop.f32.mrf.mxu0
    %v925 = vadd.f32 0.0, %v924
    %926 = vdwg.mxu0
    %v927 = vsel %vm693, %v768, 0.0
    %v928 = vrot.slane %v927, 4
    %v929 = vadd.f32 %v927, %v928
    %v930 = vrot.slane %v929, 2
    %v931 = vadd.f32 %v929, %v930
    %v932 = vrot.slane %v931, 1
    %v933 = vadd.f32 %v931, %v932
    %p934 = scmp.eq.s32.totalorder 0, 0
    // Predicated region
    $region14: #{cstta_forward.1} parent=1 // pred_check
      %p935 = pneg %p934
    $region15: #{cstta_forward.1} parent=1 // pred_check_branch
      %937 = sbr.rel (%p935) target = $region17
    $region16: #{cstta_forward.1} parent=1 // pred_region
      %vm938 = vcmask 0
      %939 = vst.msk [vmem:[#allocation4] sm:$0x1] %vm938, 0.0
      %940 = vst [vmem:[%s5] sm:$0xff] 0.0
      %941 = vst [vmem:[%s5 + $0x8] sm:$0xff] 0.0
      %942 = vst [vmem:[%s5 + $0x10] sm:$0xff] 0.0
      %943 = vst [vmem:[%s5 + $0x18] sm:$0xff] 0.0
      %944 = vst [vmem:[%s5 + $0x20] sm:$0xff] 0.0
      %945 = vst [vmem:[%s5 + $0x28] sm:$0xff] 0.0
      %946 = vst [vmem:[%s5 + $0x30] sm:$0xff] 0.0
      %947 = vst [vmem:[%s5 + $0x38] sm:$0xff] 0.0
      %948 = vst [vmem:[%s5 + $0x40] sm:$0xff] 0.0
      %949 = vst [vmem:[%s5 + $0x48] sm:$0xff] 0.0
      %950 = vst [vmem:[%s5 + $0x50] sm:$0xff] 0.0
      %951 = vst [vmem:[%s5 + $0x58] sm:$0xff] 0.0
      %952 = vst [vmem:[%s5 + $0x60] sm:$0xff] 0.0
      %953 = vst [vmem:[%s5 + $0x68] sm:$0xff] 0.0
      %954 = vst [vmem:[%s5 + $0x70] sm:$0xff] 0.0
      %955 = vst [vmem:[%s5 + $0x78] sm:$0xff] 0.0
      %vm956 = vcmask 122880
      %957 = vst.msk [vmem:[%s6] sm:$0x1] %vm956, 0.0
    $region17: #{cstta_forward.1} parent=1 // pred_fallthru
      _
    %v958 = vld [vmem:[#allocation4] sm:$0x1]
    %vm959 = vcmask 1041408
    %v960 = vsel %vm959, %v765, 0.0
    %v961 = vrot.slane %v960, 4
    %v962 = vadd.f32 %v960, %v961
    %v963 = vrot.slane %v962, 2
    %v964 = vadd.f32 %v962, %v963
    %v965 = vrot.slane %v964, 1
    %v966 = vadd.f32 %v964, %v965
    %v967 = vmul.f32 %v966, 0.5
    %v968 = vadd.f32 %v958, %v967
    %vm969 = vcmask 0
    %970 = vst.msk [vmem:[#allocation4] sm:$0x1] %vm969, %v968
    %v971 = vld [vmem:[%s5] sm:$0xff]
    %v972 = vld [vmem:[%s5 + $0x8] sm:$0xff]
    %v973 = vld [vmem:[%s5 + $0x10] sm:$0xff]
    %v974 = vld [vmem:[%s5 + $0x18] sm:$0xff]
    %v975 = vld [vmem:[%s5 + $0x20] sm:$0xff]
    %v976 = vld [vmem:[%s5 + $0x28] sm:$0xff]
    %v977 = vld [vmem:[%s5 + $0x30] sm:$0xff]
    %v978 = vld [vmem:[%s5 + $0x38] sm:$0xff]
    %v979 = vld [vmem:[%s5 + $0x40] sm:$0xff]
    %v980 = vld [vmem:[%s5 + $0x48] sm:$0xff]
    %v981 = vld [vmem:[%s5 + $0x50] sm:$0xff]
    %v982 = vld [vmem:[%s5 + $0x58] sm:$0xff]
    %v983 = vld [vmem:[%s5 + $0x60] sm:$0xff]
    %v984 = vld [vmem:[%s5 + $0x68] sm:$0xff]
    %v985 = vld [vmem:[%s5 + $0x70] sm:$0xff]
    %v986 = vld [vmem:[%s5 + $0x78] sm:$0xff]
    %v987 = vadd.f32 %v971, %v825
    %v988 = vadd.f32 %v972, %v839
    %v989 = vadd.f32 %v973, %v853
    %v990 = vadd.f32 %v974, %v867
    %v991 = vadd.f32 %v975, %v881
    %v992 = vadd.f32 %v976, %v895
    %v993 = vadd.f32 %v977, %v909
    %v994 = vadd.f32 %v978, %v923
    %v995 = vadd.f32 %v979, %v827
    %v996 = vadd.f32 %v980, %v841
    %v997 = vadd.f32 %v981, %v855
    %v998 = vadd.f32 %v982, %v869
    %v999 = vadd.f32 %v983, %v883
    %v1000 = vadd.f32 %v984, %v897
    %v1001 = vadd.f32 %v985, %v911
    %v1002 = vadd.f32 %v986, %v925
    %1003 = vst [vmem:[%s5] sm:$0xff] %v987
    %1004 = vst [vmem:[%s5 + $0x8] sm:$0xff] %v988
    %1005 = vst [vmem:[%s5 + $0x10] sm:$0xff] %v989
    %1006 = vst [vmem:[%s5 + $0x18] sm:$0xff] %v990
    %1007 = vst [vmem:[%s5 + $0x20] sm:$0xff] %v991
    %1008 = vst [vmem:[%s5 + $0x28] sm:$0xff] %v992
    %1009 = vst [vmem:[%s5 + $0x30] sm:$0xff] %v993
    %1010 = vst [vmem:[%s5 + $0x38] sm:$0xff] %v994
    %1011 = vst [vmem:[%s5 + $0x40] sm:$0xff] %v995
    %1012 = vst [vmem:[%s5 + $0x48] sm:$0xff] %v996
    %1013 = vst [vmem:[%s5 + $0x50] sm:$0xff] %v997
    %1014 = vst [vmem:[%s5 + $0x58] sm:$0xff] %v998
    %1015 = vst [vmem:[%s5 + $0x60] sm:$0xff] %v999
    %1016 = vst [vmem:[%s5 + $0x68] sm:$0xff] %v1000
    %1017 = vst [vmem:[%s5 + $0x70] sm:$0xff] %v1001
    %1018 = vst [vmem:[%s5 + $0x78] sm:$0xff] %v1002
    %v1019 = vld [vmem:[%s6] sm:$0x1]
    %v1020 = vadd.f32 %v1019, %v933
    %vm1021 = vcmask 122880
    %1022 = vst.msk [vmem:[%s6] sm:$0x1] %vm1021, %v1020
    // Predicated region
    $region18: #{cstta_forward.1} parent=1 // pred_check
      _
    $region19: #{cstta_forward.1} parent=1 // pred_check_branch
      %1024 = sbr.rel (0) target = $region21
    $region20: #{cstta_forward.1} parent=1 // pred_region
      %s1025 = sadd.s32 0, 0
      %1027 = vsyncadd [#allocation3], 0
      %s1028 = smul.addr %s1025, 2
      %s1029 = scalar_lea.hbm %s3, %s1028
      %s1031 = sshll.u32 [#allocation2], 4
      %s1032 = int_to_ptr.vmem [resolvable:$true] %s1031
      %s1033 = sshll.u32 %s1029, 4
      %s1034 = int_to_ptr.hbm [resolvable:$true] %s1033
      %1036 = dma.vmem_to_hbm [thread:$0]  %s1032, 32, %s1034, [#allocation3]
    $region21: #{cstta_forward.1} parent=1 // pred_fallthru
      _
    // Predicated region
    $region22: #{cstta_forward.1} parent=1 // pred_check
      _
    $region23: #{cstta_forward.1} parent=1 // pred_check_branch
      %1038 = sbr.rel (0) target = $region25
    $region24: #{cstta_forward.1} parent=1 // pred_region
      %1040 = vsyncadd [#allocation5], 0
      %s1042 = sshll.u32 [#allocation4], 4
      %s1043 = int_to_ptr.vmem [resolvable:$true] %s1042
      %s1044 = sshll.u32 %s4, 4
      %s1045 = int_to_ptr.hbm [resolvable:$true] %s1044
      %1047 = dma.vmem_to_hbm [thread:$0]  %s1043, 16, %s1045, [#allocation5]
    $region25: #{cstta_forward.1} parent=1 // pred_fallthru
      _
    // Predicated region
    $region26: #{cstta_forward.1} parent=1 // pred_check
      _
    $region27: #{cstta_forward.1} parent=1 // pred_check_branch
      %1049 = sbr.rel (0) target = $region29
    $region28: #{cstta_forward.1} parent=1 // pred_region
      _
    $region29: #{cstta_forward.1} parent=1 // pred_fallthru
      _
    // Predicated region
    $region30: #{cstta_forward.1} parent=1 // pred_check
      _
    $region31: #{cstta_forward.1} parent=1 // pred_check_branch
      %1051 = sbr.rel (0) target = $region33
    $region32: #{cstta_forward.1} parent=1 // pred_region
      _
    $region33: #{cstta_forward.1} parent=1 // pred_fallthru
      _
    // Predicated region
    $region34: #{cstta_forward.1} parent=1 // pred_check
      _
    $region35: #{cstta_forward.1} parent=1 // pred_check_branch
      %1053 = sbr.rel (0) target = $region37
    $region36: #{cstta_forward.1} parent=1 // pred_region
      %1055 = dma.done [#allocation3], 32
    $region37: #{cstta_forward.1} parent=1 // pred_fallthru
      _
    // Predicated region
    $region38: #{cstta_forward.1} parent=1 // pred_check
      _
    $region39: #{cstta_forward.1} parent=1 // pred_check_branch
      %1057 = sbr.rel (0) target = $region41
    $region40: #{cstta_forward.1} parent=1 // pred_region
      %1059 = dma.done [#allocation5], 16
    $region41: #{cstta_forward.1} parent=1 // pred_fallthru
      _
    // Predicated region
    $region42: #{cstta_forward.1} parent=1 // pred_check
      _
    $region43: #{cstta_forward.1} parent=1 // pred_check_branch
      %1061 = sbr.rel (0) target = $region45
    $region44: #{cstta_forward.1} parent=1 // pred_region
      _
    $region45: #{cstta_forward.1} parent=1 // pred_fallthru
      _
    // Predicated region
    $region46: #{cstta_forward.1} parent=1 // pred_check
      _
    $region47: #{cstta_forward.1} parent=1 // pred_check_branch
      %1063 = sbr.rel (0) target = $region49
    $region48: #{cstta_forward.1} parent=1 // pred_region
      _
    $region49: #{cstta_forward.1} parent=1 // pred_fallthru
      _
    %1064 = vsyncpa [#allocation3], 1
    %1065 = vsyncpa [#allocation5], 1

</llo_original>
